<compile_context>
chip_gen: v7x
topology: tpu7x:2x2x1
jax: 0.10.0
libtpu: 0.0.40
codegen_flags: <defaults>
</compile_context>

<pallas_src>
import jax
import jax.numpy as jnp
from jax.experimental import pallas as pl
from jax.experimental.pallas import tpu as pltpu

_IN, _HID, _OUT = 5, 3, 1

# Offsets into the flat packed parameter vector (PyTorch row-major layouts).
_W1_OFF = 0                      # lin1.weight (3, 5) -> 15 scalars
_B1_OFF = _W1_OFF + _HID * _IN   # lin1.bias   (3,)   -> 3 scalars
_W2_OFF = _B1_OFF + _HID         # lin2.weight (1, 3) -> 3 scalars
_B2_OFF = _W2_OFF + _HID         # lin2.bias   (1,)   -> 1 scalar
_N_PARAMS = _B2_OFF + 1          # 22


def mlp_kernel(params_ref, xT_ref, oT_ref):
    """params_ref: (22,) f32 SMEM; xT_ref: (5, TR, C) f32; oT_ref: (TR, C) f32."""
    # Read all parameters from SMEM into locals once, off the vector path.
    w1 = [params_ref[_W1_OFF + i] for i in range(_HID * _IN)]
    b1 = [params_ref[_B1_OFF + j] for j in range(_HID)]
    w2 = [params_ref[_W2_OFF + j] for j in range(_HID)]
    b2 = params_ref[_B2_OFF]

    # Hoist the 5 feature-plane loads out of the hidden-unit loop.
    xk = [xT_ref[k] for k in range(_IN)]        # each (TR, C), dense vregs

    # y = W2 @ relu(W1 @ x + b1) + b2, computed as broadcast FMAs on the VPU.
    y = None
    for j in range(_HID):
        h = xk[0] * w1[j * _IN + 0]
        for k in range(1, _IN):
            h = h + xk[k] * w1[j * _IN + k]
        h = jnp.maximum(h + b1[j], 0.0)          # ReLU, (TR, C)
        contrib = h * w2[j]
        y = contrib if y is None else y + contrib
    oT_ref[...] = y + b2                          # dense (TR, C) store


def mlp_forward(x, w1, b1, w2, b2, *, lane_width=512, target_tile_elems=65536):
    """x: (B, 5) f32.  Weights in PyTorch layout: w1 (3,5), b1 (3,), w2 (1,3), b2 (1,)."""
    B = x.shape[0]
    params = jnp.concatenate(
        [w1.reshape(-1), b1.reshape(-1), w2.reshape(-1), b2.reshape(-1)]
    ).astype(jnp.float32)                                    # (22,)

    # --- choose a (sublane x lane)-dense batch layout -----------------------
    C = max(128, (lane_width // 128) * 128)                  # lanes, mult of 128
    R = pl.cdiv(pl.cdiv(max(B, 1), C), 8) * 8                # total rows, mult of 8
    # rows per grid step: multiple of 8, ~target_tile_elems batch elems per step
    TR = max(8, min(R, ((target_tile_elems // C) // 8) * 8))
    # v7x megacore: when the batch allows, use >= 2 grid steps.
    if R >= 16 and TR > R // 2:
        TR = max(8, ((R // 2) // 8) * 8)
    R = pl.cdiv(R, TR) * TR                                  # R divisible by TR
    padded = R * C
    grid = (R // TR,)

    # Layout plumbing (single pass): (B, 5) -> dense (5, R, C) slab.
    xT = (
        jnp.zeros((_IN, padded), jnp.float32)
        .at[:, :B].set(x.T.astype(jnp.float32))
        .reshape(_IN, R, C)
    )

    yT = pl.pallas_call(
        mlp_kernel,
        out_shape=jax.ShapeDtypeStruct((R, C), jnp.float32),
        grid_spec=pltpu.PrefetchScalarGridSpec(
            num_scalar_prefetch=1,                           # params -> SMEM
            grid=grid,
            in_specs=[pl.BlockSpec((_IN, TR, C), lambda i, p: (0, i, 0))],
            out_specs=pl.BlockSpec((TR, C), lambda i, p: (i, 0)),
        ),
        compiler_params=pltpu.CompilerParams(
            dimension_semantics=("parallel",)),              # megacore on v7x
    )(params, xT)

    # Plain row-major reshape/slice back to the PyTorch output shape (B, 1).
    return yT.reshape(-1)[:B].reshape(B, 1)


def reference_forward(x, w1, b1, w2, b2):
    h = jnp.maximum(x @ w1.T + b1, 0.0)
    return h @ w2.T + b2


if __name__ == "__main__":
    key = jax.random.PRNGKey(0)
    kx, k1, k2, k3, k4, kx2 = jax.random.split(key, 6)
    # Parameters in PyTorch nn.Linear layout: weight (out, in), bias (out,)
    w1 = jax.random.normal(k1, (_HID, _IN), jnp.float32) * 0.4
    b1 = jax.random.normal(k2, (_HID,), jnp.float32) * 0.1
    w2 = jax.random.normal(k3, (_OUT, _HID), jnp.float32) * 0.4
    b2 = jax.random.normal(k4, (_OUT,), jnp.float32) * 0.1

    # Small batch, consistent with the module's (*, 5) input.
    B = 8
    x = jax.random.normal(kx, (B, _IN), jnp.float32)
    out = jax.block_until_ready(mlp_forward(x, w1, b1, w2, b2))
    ref = reference_forward(x, w1, b1, w2, b2)
    assert out.shape == (B, 1)
    assert jnp.allclose(out, ref, atol=1e-5, rtol=1e-5)

    # Second check: non-multiple batch exercising padding + multi-step grid.
    B2 = 10000
    x2 = jax.random.normal(kx2, (B2, _IN), jnp.float32)
    out2 = jax.block_until_ready(mlp_forward(x2, w1, b1, w2, b2))
    ref2 = reference_forward(x2, w1, b1, w2, b2)
    assert out2.shape == (B2, 1)
    assert jnp.allclose(out2, ref2, atol=1e-5, rtol=1e-5)

    print("KERNEL_OK")
</pallas_src>

<mosaic_0001>
module attributes {stable_mosaic.version = 11 : i64} {
  func.func @mlp_kernel(%arg0: i32, %arg1: memref<22xf32, #tpu.memory_space<smem>>, %arg2: memref<5x8x512xf32, #tpu.memory_space<vmem>>, %arg3: memref<8x512xf32, #tpu.memory_space<vmem>>) attributes {dimension_semantics = [#tpu.dimension_semantics<parallel>], iteration_bounds = array<i64: 1>, scalar_prefetch = 1 : i64, scratch_operands = 0 : i64, tpu.core_type = #tpu.core_type<tc>, window_params = [{transform_indices = @transform_0, window_bounds = array<i64: 5, 8, 512>}, {transform_indices = @transform_1, window_bounds = array<i64: 8, 512>}]} {
    %c0 = arith.constant 0 : index
    %0 = memref.load %arg1[%c0] : memref<22xf32, #tpu.memory_space<smem>>
    %c1 = arith.constant 1 : index
    %1 = memref.load %arg1[%c1] : memref<22xf32, #tpu.memory_space<smem>>
    %c2 = arith.constant 2 : index
    %2 = memref.load %arg1[%c2] : memref<22xf32, #tpu.memory_space<smem>>
    %c3 = arith.constant 3 : index
    %3 = memref.load %arg1[%c3] : memref<22xf32, #tpu.memory_space<smem>>
    %c4 = arith.constant 4 : index
    %4 = memref.load %arg1[%c4] : memref<22xf32, #tpu.memory_space<smem>>
    %c5 = arith.constant 5 : index
    %5 = memref.load %arg1[%c5] : memref<22xf32, #tpu.memory_space<smem>>
    %c6 = arith.constant 6 : index
    %6 = memref.load %arg1[%c6] : memref<22xf32, #tpu.memory_space<smem>>
    %c7 = arith.constant 7 : index
    %7 = memref.load %arg1[%c7] : memref<22xf32, #tpu.memory_space<smem>>
    %c8 = arith.constant 8 : index
    %8 = memref.load %arg1[%c8] : memref<22xf32, #tpu.memory_space<smem>>
    %c9 = arith.constant 9 : index
    %9 = memref.load %arg1[%c9] : memref<22xf32, #tpu.memory_space<smem>>
    %c10 = arith.constant 10 : index
    %10 = memref.load %arg1[%c10] : memref<22xf32, #tpu.memory_space<smem>>
    %c11 = arith.constant 11 : index
    %11 = memref.load %arg1[%c11] : memref<22xf32, #tpu.memory_space<smem>>
    %c12 = arith.constant 12 : index
    %12 = memref.load %arg1[%c12] : memref<22xf32, #tpu.memory_space<smem>>
    %c13 = arith.constant 13 : index
    %13 = memref.load %arg1[%c13] : memref<22xf32, #tpu.memory_space<smem>>
    %c14 = arith.constant 14 : index
    %14 = memref.load %arg1[%c14] : memref<22xf32, #tpu.memory_space<smem>>
    %c15 = arith.constant 15 : index
    %15 = memref.load %arg1[%c15] : memref<22xf32, #tpu.memory_space<smem>>
    %c16 = arith.constant 16 : index
    %16 = memref.load %arg1[%c16] : memref<22xf32, #tpu.memory_space<smem>>
    %c17 = arith.constant 17 : index
    %17 = memref.load %arg1[%c17] : memref<22xf32, #tpu.memory_space<smem>>
    %c18 = arith.constant 18 : index
    %18 = memref.load %arg1[%c18] : memref<22xf32, #tpu.memory_space<smem>>
    %c19 = arith.constant 19 : index
    %19 = memref.load %arg1[%c19] : memref<22xf32, #tpu.memory_space<smem>>
    %c20 = arith.constant 20 : index
    %20 = memref.load %arg1[%c20] : memref<22xf32, #tpu.memory_space<smem>>
    %c21 = arith.constant 21 : index
    %21 = memref.load %arg1[%c21] : memref<22xf32, #tpu.memory_space<smem>>
    %c0_0 = arith.constant 0 : index
    %c0_1 = arith.constant 0 : index
    %c0_2 = arith.constant 0 : index
    %22 = vector.load %arg2[%c0_0, %c0_1, %c0_2] : memref<5x8x512xf32, #tpu.memory_space<vmem>>, vector<1x8x512xf32>
    %23 = vector.shape_cast %22 : vector<1x8x512xf32> to vector<8x512xf32>
    %c1_3 = arith.constant 1 : index
    %c0_4 = arith.constant 0 : index
    %c0_5 = arith.constant 0 : index
    %24 = vector.load %arg2[%c1_3, %c0_4, %c0_5] : memref<5x8x512xf32, #tpu.memory_space<vmem>>, vector<1x8x512xf32>
    %25 = vector.shape_cast %24 : vector<1x8x512xf32> to vector<8x512xf32>
    %c2_6 = arith.constant 2 : index
    %c0_7 = arith.constant 0 : index
    %c0_8 = arith.constant 0 : index
    %26 = vector.load %arg2[%c2_6, %c0_7, %c0_8] : memref<5x8x512xf32, #tpu.memory_space<vmem>>, vector<1x8x512xf32>
    %27 = vector.shape_cast %26 : vector<1x8x512xf32> to vector<8x512xf32>
    %c3_9 = arith.constant 3 : index
    %c0_10 = arith.constant 0 : index
    %c0_11 = arith.constant 0 : index
    %28 = vector.load %arg2[%c3_9, %c0_10, %c0_11] : memref<5x8x512xf32, #tpu.memory_space<vmem>>, vector<1x8x512xf32>
    %29 = vector.shape_cast %28 : vector<1x8x512xf32> to vector<8x512xf32>
    %c4_12 = arith.constant 4 : index
    %c0_13 = arith.constant 0 : index
    %c0_14 = arith.constant 0 : index
    %30 = vector.load %arg2[%c4_12, %c0_13, %c0_14] : memref<5x8x512xf32, #tpu.memory_space<vmem>>, vector<1x8x512xf32>
    %31 = vector.shape_cast %30 : vector<1x8x512xf32> to vector<8x512xf32>
    %32 = vector.broadcast %0 : f32 to vector<8x512xf32>
    %33 = arith.mulf %23, %32 : vector<8x512xf32>
    %34 = vector.broadcast %1 : f32 to vector<8x512xf32>
    %35 = arith.mulf %25, %34 : vector<8x512xf32>
    %36 = arith.addf %33, %35 : vector<8x512xf32>
    %37 = vector.broadcast %2 : f32 to vector<8x512xf32>
    %38 = arith.mulf %27, %37 : vector<8x512xf32>
    %39 = arith.addf %36, %38 : vector<8x512xf32>
    %40 = vector.broadcast %3 : f32 to vector<8x512xf32>
    %41 = arith.mulf %29, %40 : vector<8x512xf32>
    %42 = arith.addf %39, %41 : vector<8x512xf32>
    %43 = vector.broadcast %4 : f32 to vector<8x512xf32>
    %44 = arith.mulf %31, %43 : vector<8x512xf32>
    %45 = arith.addf %42, %44 : vector<8x512xf32>
    %46 = vector.broadcast %15 : f32 to vector<8x512xf32>
    %47 = arith.addf %45, %46 : vector<8x512xf32>
    %cst = arith.constant 0.000000e+00 : f32
    %48 = vector.broadcast %cst : f32 to vector<8x512xf32>
    %49 = arith.maximumf %47, %48 : vector<8x512xf32>
    %50 = vector.broadcast %18 : f32 to vector<8x512xf32>
    %51 = arith.mulf %49, %50 : vector<8x512xf32>
    %52 = vector.broadcast %5 : f32 to vector<8x512xf32>
    %53 = arith.mulf %23, %52 : vector<8x512xf32>
    %54 = vector.broadcast %6 : f32 to vector<8x512xf32>
    %55 = arith.mulf %25, %54 : vector<8x512xf32>
    %56 = arith.addf %53, %55 : vector<8x512xf32>
    %57 = vector.broadcast %7 : f32 to vector<8x512xf32>
    %58 = arith.mulf %27, %57 : vector<8x512xf32>
    %59 = arith.addf %56, %58 : vector<8x512xf32>
    %60 = vector.broadcast %8 : f32 to vector<8x512xf32>
    %61 = arith.mulf %29, %60 : vector<8x512xf32>
    %62 = arith.addf %59, %61 : vector<8x512xf32>
    %63 = vector.broadcast %9 : f32 to vector<8x512xf32>
    %64 = arith.mulf %31, %63 : vector<8x512xf32>
    %65 = arith.addf %62, %64 : vector<8x512xf32>
    %66 = vector.broadcast %16 : f32 to vector<8x512xf32>
    %67 = arith.addf %65, %66 : vector<8x512xf32>
    %cst_15 = arith.constant 0.000000e+00 : f32
    %68 = vector.broadcast %cst_15 : f32 to vector<8x512xf32>
    %69 = arith.maximumf %67, %68 : vector<8x512xf32>
    %70 = vector.broadcast %19 : f32 to vector<8x512xf32>
    %71 = arith.mulf %69, %70 : vector<8x512xf32>
    %72 = arith.addf %51, %71 : vector<8x512xf32>
    %73 = vector.broadcast %10 : f32 to vector<8x512xf32>
    %74 = arith.mulf %23, %73 : vector<8x512xf32>
    %75 = vector.broadcast %11 : f32 to vector<8x512xf32>
    %76 = arith.mulf %25, %75 : vector<8x512xf32>
    %77 = arith.addf %74, %76 : vector<8x512xf32>
    %78 = vector.broadcast %12 : f32 to vector<8x512xf32>
    %79 = arith.mulf %27, %78 : vector<8x512xf32>
    %80 = arith.addf %77, %79 : vector<8x512xf32>
    %81 = vector.broadcast %13 : f32 to vector<8x512xf32>
    %82 = arith.mulf %29, %81 : vector<8x512xf32>
    %83 = arith.addf %80, %82 : vector<8x512xf32>
    %84 = vector.broadcast %14 : f32 to vector<8x512xf32>
    %85 = arith.mulf %31, %84 : vector<8x512xf32>
    %86 = arith.addf %83, %85 : vector<8x512xf32>
    %87 = vector.broadcast %17 : f32 to vector<8x512xf32>
    %88 = arith.addf %86, %87 : vector<8x512xf32>
    %cst_16 = arith.constant 0.000000e+00 : f32
    %89 = vector.broadcast %cst_16 : f32 to vector<8x512xf32>
    %90 = arith.maximumf %88, %89 : vector<8x512xf32>
    %91 = vector.broadcast %20 : f32 to vector<8x512xf32>
    %92 = arith.mulf %90, %91 : vector<8x512xf32>
    %93 = arith.addf %72, %92 : vector<8x512xf32>
    %94 = vector.broadcast %21 : f32 to vector<8x512xf32>
    %95 = arith.addf %93, %94 : vector<8x512xf32>
    %c0_17 = arith.constant 0 : index
    %c0_18 = arith.constant 0 : index
    %96 = vector.load %arg3[%c0_17, %c0_18] : memref<8x512xf32, #tpu.memory_space<vmem>>, vector<8x512xf32>
    tpu.vector_store %arg3[%c0_17, %c0_18], %95 {strides = array<i32>} : memref<8x512xf32, #tpu.memory_space<vmem>>, vector<8x512xf32>,
    return
  }
  func.func @transform_0(%arg0: i32, %arg1: memref<22xf32, #tpu.memory_space<smem>>) -> (i32, i32, i32) {
    %c0_i32 = arith.constant 0 : i32
    %c0_i32_0 = arith.constant 0 : i32
    %c0_i32_1 = arith.constant 0 : i32
    return %c0_i32, %arg0, %c0_i32_0 : i32, i32, i32
  }
  func.func @transform_1(%arg0: i32, %arg1: memref<22xf32, #tpu.memory_space<smem>>) -> (i32, i32) {
    %c0_i32 = arith.constant 0 : i32
    %c0_i32_0 = arith.constant 0 : i32
    return %arg0, %c0_i32 : i32, i32
  }
}

</mosaic_0001>

<llo_original>
// kernel: tpu_custom_call.1
$region0: #{tpu_custom_call.1}
  #allocation0 [shape = 'u32[]', space=smem, size = 0x4, offset = 0x4, fixed_abs, tag = 'smem constant byte address 0x4 - core index']
  #allocation1 [shape = 'u32[144,128]{1,0:T(1,128)}', space=vmem, size = 0x12000, scoped, tag = 'internal scratch']
  #allocation2 [shape = 's32[1]{0}', space=sflag, size = 0x4, scoped, tag = 'scoped memory for tpu_custom_call.1']
  #allocation3 [shape = 'u8[512]{0}', space=smem, size = 0x200, scoped, tag = 'prefetched SMEM operand 0']
  %s0 = inlined_call_operand.hbm [shape: f32[22], index: 0, kind: input, shape index: {}]
  %s1 = inlined_call_operand.hbm [shape: f32[5,8,512], index: 1, kind: input, shape index: {}]
  %s2 = inlined_call_operand.hbm [shape: f32[8,512], index: 2, kind: output, shape index: {}]
  %s3 = sld [smem:[#allocation0]]
  $region18: #{tpu_custom_call.1} parent=0
    _
  %s5 = ssub.s32 1, %s3
  %s6 = scalar_select 0, %s5, %s3
  %8 = dma.hbm_to_smem %s0, 16, [#allocation3], [#allocation2]
  %9 = dma.done [#allocation2], 16
  %10 = sfence
  $region1: #{tpu_custom_call.1} parent=0
    #allocation4 [shape = 'u8[81920]{0}', space=vmem, size = 0x14000, scoped, tag = 'input window, operand 1, single buffered']
    #allocation5 [shape = 's32[1]{0}', space=sflag, size = 0x4, scoped, tag = 'scoped memory for tpu_custom_call.1']
    #allocation6 [shape = 's32[1]{0}', space=sflag, size = 0x4, scoped, tag = 'scoped memory for tpu_custom_call.1']
    #allocation7 [shape = 'u8[16384]{0}', space=vmem, size = 0x4000, scoped, tag = 'output window, operand 0, single buffered']
    %11 = vsyncpa [#allocation5], 0
    %12 = vsyncpa [#allocation6], 0
    // Predicated region
    $region2: #{tpu_custom_call.1} parent=1 // pred_check
      _
    $region3: #{tpu_custom_call.1} parent=1 // pred_check_branch
      %14 = sbr.rel (0) target = $region5
    $region4: #{tpu_custom_call.1} parent=1 // pred_region
      %s16 = ssub.s32 2560, 2560
      %17 = vsyncadd [#allocation5], %s16
      %s18 = sshll.u32 [#allocation4], 4
      %s19 = int_to_ptr.vmem [resolvable:$true] %s18
      %24 = dma.hbm_to_vmem [thread:$0]  %s1, 2560, %s19, [#allocation5], 512, 512, 32
    $region5: #{tpu_custom_call.1} parent=1 // pred_fallthru
      _
    // Predicated region
    $region6: #{tpu_custom_call.1} parent=1 // pred_check
      _
    $region7: #{tpu_custom_call.1} parent=1 // pred_check_branch
      %26 = sbr.rel (0) target = $region9
    $region8: #{tpu_custom_call.1} parent=1 // pred_region
      %27 = dma.done [#allocation5], 2560
    $region9: #{tpu_custom_call.1} parent=1 // pred_fallthru
      _
    %s28 = sld [smem:[#allocation3]]
    %s29 = sld [smem:[#allocation3 + $0x1]]
    %s30 = sld [smem:[#allocation3 + $0x2]]
    %s31 = sld [smem:[#allocation3 + $0x3]]
    %s32 = sld [smem:[#allocation3 + $0x4]]
    %s33 = sld [smem:[#allocation3 + $0x5]]
    %s34 = sld [smem:[#allocation3 + $0x6]]
    %s35 = sld [smem:[#allocation3 + $0x7]]
    %s36 = sld [smem:[#allocation3 + $0x8]]
    %s37 = sld [smem:[#allocation3 + $0x9]]
    %s38 = sld [smem:[#allocation3 + $0xa]]
    %s39 = sld [smem:[#allocation3 + $0xb]]
    %s40 = sld [smem:[#allocation3 + $0xc]]
    %s41 = sld [smem:[#allocation3 + $0xd]]
    %s42 = sld [smem:[#allocation3 + $0xe]]
    %s43 = sld [smem:[#allocation3 + $0xf]]
    %s44 = sld [smem:[#allocation3 + $0x10]]
    %s45 = sld [smem:[#allocation3 + $0x11]]
    %s46 = sld [smem:[#allocation3 + $0x12]]
    %s47 = sld [smem:[#allocation3 + $0x13]]
    %s48 = sld [smem:[#allocation3 + $0x14]]
    %s49 = sld [smem:[#allocation3 + $0x15]]
    %v50 = vld [vmem:[#allocation4] sm:$0xff]
    %v51 = vld [vmem:[#allocation4 + $0x8] sm:$0xff]
    %v52 = vld [vmem:[#allocation4 + $0x10] sm:$0xff]
    %v53 = vld [vmem:[#allocation4 + $0x18] sm:$0xff]
    %s54 = scalar_lea.vmem [#allocation4], 32
    %v55 = vld [vmem:[%s54] sm:$0xff]
    %v56 = vld [vmem:[%s54 + $0x8] sm:$0xff]
    %v57 = vld [vmem:[%s54 + $0x10] sm:$0xff]
    %v58 = vld [vmem:[%s54 + $0x18] sm:$0xff]
    %s59 = scalar_lea.vmem [#allocation4], 64
    %v60 = vld [vmem:[%s59] sm:$0xff]
    %v61 = vld [vmem:[%s59 + $0x8] sm:$0xff]
    %v62 = vld [vmem:[%s59 + $0x10] sm:$0xff]
    %v63 = vld [vmem:[%s59 + $0x18] sm:$0xff]
    %s64 = scalar_lea.vmem [#allocation4], 96
    %v65 = vld [vmem:[%s64] sm:$0xff]
    %v66 = vld [vmem:[%s64 + $0x8] sm:$0xff]
    %v67 = vld [vmem:[%s64 + $0x10] sm:$0xff]
    %v68 = vld [vmem:[%s64 + $0x18] sm:$0xff]
    %s69 = scalar_lea.vmem [#allocation4], 128
    %v70 = vld [vmem:[%s69] sm:$0xff]
    %v71 = vld [vmem:[%s69 + $0x8] sm:$0xff]
    %v72 = vld [vmem:[%s69 + $0x10] sm:$0xff]
    %v73 = vld [vmem:[%s69 + $0x18] sm:$0xff]
    %v74 = vstv %s28
    %v75 = vmul.f32 %v50, %v74
    %v76 = vmul.f32 %v51, %v74
    %v77 = vmul.f32 %v52, %v74
    %v78 = vmul.f32 %v53, %v74
    %v79 = vstv %s29
    %v80 = vmul.f32 %v55, %v79
    %v81 = vmul.f32 %v56, %v79
    %v82 = vmul.f32 %v57, %v79
    %v83 = vmul.f32 %v58, %v79
    %v84 = vadd.f32 %v75, %v80
    %v85 = vadd.f32 %v76, %v81
    %v86 = vadd.f32 %v77, %v82
    %v87 = vadd.f32 %v78, %v83
    %v88 = vstv %s30
    %v89 = vmul.f32 %v60, %v88
    %v90 = vmul.f32 %v61, %v88
    %v91 = vmul.f32 %v62, %v88
    %v92 = vmul.f32 %v63, %v88
    %v93 = vadd.f32 %v84, %v89
    %v94 = vadd.f32 %v85, %v90
    %v95 = vadd.f32 %v86, %v91
    %v96 = vadd.f32 %v87, %v92
    %v97 = vstv %s31
    %v98 = vmul.f32 %v65, %v97
    %v99 = vmul.f32 %v66, %v97
    %v100 = vmul.f32 %v67, %v97
    %v101 = vmul.f32 %v68, %v97
    %v102 = vadd.f32 %v93, %v98
    %v103 = vadd.f32 %v94, %v99
    %v104 = vadd.f32 %v95, %v100
    %v105 = vadd.f32 %v96, %v101
    %v106 = vstv %s32
    %v107 = vmul.f32 %v70, %v106
    %v108 = vmul.f32 %v71, %v106
    %v109 = vmul.f32 %v72, %v106
    %v110 = vmul.f32 %v73, %v106
    %v111 = vadd.f32 %v102, %v107
    %v112 = vadd.f32 %v103, %v108
    %v113 = vadd.f32 %v104, %v109
    %v114 = vadd.f32 %v105, %v110
    %v115 = vstv %s43
    %v116 = vadd.f32 %v111, %v115
    %v117 = vadd.f32 %v112, %v115
    %v118 = vadd.f32 %v113, %v115
    %v119 = vadd.f32 %v114, %v115
    %v120 = vmax.f32 %v116, 0.0
    %v121 = vmax.f32 %v117, 0.0
    %v122 = vmax.f32 %v118, 0.0
    %v123 = vmax.f32 %v119, 0.0
    %v124 = vstv %s46
    %v125 = vmul.f32 %v120, %v124
    %v126 = vmul.f32 %v121, %v124
    %v127 = vmul.f32 %v122, %v124
    %v128 = vmul.f32 %v123, %v124
    %v129 = vstv %s33
    %v130 = vmul.f32 %v50, %v129
    %v131 = vmul.f32 %v51, %v129
    %v132 = vmul.f32 %v52, %v129
    %v133 = vmul.f32 %v53, %v129
    %v134 = vstv %s34
    %v135 = vmul.f32 %v55, %v134
    %v136 = vmul.f32 %v56, %v134
    %v137 = vmul.f32 %v57, %v134
    %v138 = vmul.f32 %v58, %v134
    %v139 = vadd.f32 %v130, %v135
    %v140 = vadd.f32 %v131, %v136
    %v141 = vadd.f32 %v132, %v137
    %v142 = vadd.f32 %v133, %v138
    %v143 = vstv %s35
    %v144 = vmul.f32 %v60, %v143
    %v145 = vmul.f32 %v61, %v143
    %v146 = vmul.f32 %v62, %v143
    %v147 = vmul.f32 %v63, %v143
    %v148 = vadd.f32 %v139, %v144
    %v149 = vadd.f32 %v140, %v145
    %v150 = vadd.f32 %v141, %v146
    %v151 = vadd.f32 %v142, %v147
    %v152 = vstv %s36
    %v153 = vmul.f32 %v65, %v152
    %v154 = vmul.f32 %v66, %v152
    %v155 = vmul.f32 %v67, %v152
    %v156 = vmul.f32 %v68, %v152
    %v157 = vadd.f32 %v148, %v153
    %v158 = vadd.f32 %v149, %v154
    %v159 = vadd.f32 %v150, %v155
    %v160 = vadd.f32 %v151, %v156
    %v161 = vstv %s37
    %v162 = vmul.f32 %v70, %v161
    %v163 = vmul.f32 %v71, %v161
    %v164 = vmul.f32 %v72, %v161
    %v165 = vmul.f32 %v73, %v161
    %v166 = vadd.f32 %v157, %v162
    %v167 = vadd.f32 %v158, %v163
    %v168 = vadd.f32 %v159, %v164
    %v169 = vadd.f32 %v160, %v165
    %v170 = vstv %s44
    %v171 = vadd.f32 %v166, %v170
    %v172 = vadd.f32 %v167, %v170
    %v173 = vadd.f32 %v168, %v170
    %v174 = vadd.f32 %v169, %v170
    %v175 = vmax.f32 %v171, 0.0
    %v176 = vmax.f32 %v172, 0.0
    %v177 = vmax.f32 %v173, 0.0
    %v178 = vmax.f32 %v174, 0.0
    %v179 = vstv %s47
    %v180 = vmul.f32 %v175, %v179
    %v181 = vmul.f32 %v176, %v179
    %v182 = vmul.f32 %v177, %v179
    %v183 = vmul.f32 %v178, %v179
    %v184 = vadd.f32 %v125, %v180
    %v185 = vadd.f32 %v126, %v181
    %v186 = vadd.f32 %v127, %v182
    %v187 = vadd.f32 %v128, %v183
    %v188 = vstv %s38
    %v189 = vmul.f32 %v50, %v188
    %v190 = vmul.f32 %v51, %v188
    %v191 = vmul.f32 %v52, %v188
    %v192 = vmul.f32 %v53, %v188
    %v193 = vstv %s39
    %v194 = vmul.f32 %v55, %v193
    %v195 = vmul.f32 %v56, %v193
    %v196 = vmul.f32 %v57, %v193
    %v197 = vmul.f32 %v58, %v193
    %v198 = vadd.f32 %v189, %v194
    %v199 = vadd.f32 %v190, %v195
    %v200 = vadd.f32 %v191, %v196
    %v201 = vadd.f32 %v192, %v197
    %v202 = vstv %s40
    %v203 = vmul.f32 %v60, %v202
    %v204 = vmul.f32 %v61, %v202
    %v205 = vmul.f32 %v62, %v202
    %v206 = vmul.f32 %v63, %v202
    %v207 = vadd.f32 %v198, %v203
    %v208 = vadd.f32 %v199, %v204
    %v209 = vadd.f32 %v200, %v205
    %v210 = vadd.f32 %v201, %v206
    %v211 = vstv %s41
    %v212 = vmul.f32 %v65, %v211
    %v213 = vmul.f32 %v66, %v211
    %v214 = vmul.f32 %v67, %v211
    %v215 = vmul.f32 %v68, %v211
    %v216 = vadd.f32 %v207, %v212
    %v217 = vadd.f32 %v208, %v213
    %v218 = vadd.f32 %v209, %v214
    %v219 = vadd.f32 %v210, %v215
    %v220 = vstv %s42
    %v221 = vmul.f32 %v70, %v220
    %v222 = vmul.f32 %v71, %v220
    %v223 = vmul.f32 %v72, %v220
    %v224 = vmul.f32 %v73, %v220
    %v225 = vadd.f32 %v216, %v221
    %v226 = vadd.f32 %v217, %v222
    %v227 = vadd.f32 %v218, %v223
    %v228 = vadd.f32 %v219, %v224
    %v229 = vstv %s45
    %v230 = vadd.f32 %v225, %v229
    %v231 = vadd.f32 %v226, %v229
    %v232 = vadd.f32 %v227, %v229
    %v233 = vadd.f32 %v228, %v229
    %v234 = vmax.f32 %v230, 0.0
    %v235 = vmax.f32 %v231, 0.0
    %v236 = vmax.f32 %v232, 0.0
    %v237 = vmax.f32 %v233, 0.0
    %v238 = vstv %s48
    %v239 = vmul.f32 %v234, %v238
    %v240 = vmul.f32 %v235, %v238
    %v241 = vmul.f32 %v236, %v238
    %v242 = vmul.f32 %v237, %v238
    %v243 = vadd.f32 %v184, %v239
    %v244 = vadd.f32 %v185, %v240
    %v245 = vadd.f32 %v186, %v241
    %v246 = vadd.f32 %v187, %v242
    %v247 = vstv %s49
    %v248 = vadd.f32 %v243, %v247
    %v249 = vadd.f32 %v244, %v247
    %v250 = vadd.f32 %v245, %v247
    %v251 = vadd.f32 %v246, %v247
    %252 = vst [vmem:[#allocation7] sm:$0xff] %v248
    %253 = vst [vmem:[#allocation7 + $0x8] sm:$0xff] %v249
    %254 = vst [vmem:[#allocation7 + $0x10] sm:$0xff] %v250
    %255 = vst [vmem:[#allocation7 + $0x18] sm:$0xff] %v251
    // Predicated region
    $region10: #{tpu_custom_call.1} parent=1 // pred_check
      _
    $region11: #{tpu_custom_call.1} parent=1 // pred_check_branch
      %257 = sbr.rel (0) target = $region13
    $region12: #{tpu_custom_call.1} parent=1 // pred_region
      %s259 = ssub.s32 512, 512
      %260 = vsyncadd [#allocation6], %s259
      %s262 = sshll.u32 [#allocation7], 4
      %s263 = int_to_ptr.vmem [resolvable:$true] %s262
      %265 = dma.vmem_to_hbm [thread:$0]  %s263, 512, %s2, [#allocation6]
    $region13: #{tpu_custom_call.1} parent=1 // pred_fallthru
      _
    // Predicated region
    $region14: #{tpu_custom_call.1} parent=1 // pred_check
      _
    $region15: #{tpu_custom_call.1} parent=1 // pred_check_branch
      %267 = sbr.rel (0) target = $region17
    $region16: #{tpu_custom_call.1} parent=1 // pred_region
      %268 = dma.done [#allocation6], 512
    $region17: #{tpu_custom_call.1} parent=1 // pred_fallthru
      _
    %269 = vsyncpa [#allocation5], 1
    %270 = vsyncpa [#allocation6], 1

</llo_original>
